<compile_context>
chip_gen: v7x
topology: tpu7x:2x2x1
jax: 0.10.0
libtpu: 0.0.40
codegen_flags: <defaults>
</compile_context>

<pallas_src>
import jax
import jax.numpy as jnp
from jax.experimental import pallas as pl
from jax.experimental.pallas import tpu as pltpu

_LANES = 128


def _make_scaler_kernel(inv_rate):
    """Elementwise x * inv_rate; inv_rate is a compile-time Python float."""

    def kernel(x_ref, o_ref):
        o_ref[...] = (x_ref[...] * inv_rate).astype(o_ref.dtype)

    return kernel


def _round_up(v, m):
    return ((v + m - 1) // m) * m


def _min_sublanes(dtype):
    """Minimum sublane multiple for a legal/efficient tile of this dtype."""
    itemsize = jnp.dtype(dtype).itemsize
    return max(8, 32 // max(1, itemsize))  # 8 (f32), 16 (bf16), 32 (int8/fp8)


def _block_config():
    """(target block bytes, vmem_limit_bytes or None) per TPU generation."""
    try:
        kind = jax.devices()[0].device_kind.lower()
    except Exception:  # pragma: no cover - defensive; default is safe anywhere
        kind = ""
    if "v7" in kind:
        # 8 MiB blocks; 4 buffers (in+out, double-buffered) = 32 MiB, which
        # needs the scoped-VMEM limit raised but stays under 64 MiB physical.
        return 8 << 20, 48 << 20
    if "v6" in kind:
        # 4 MiB blocks; 4 x 4 MiB = 16 MiB < 32 MiB scoped default.
        return 4 << 20, None
    # v5e (16 MiB scoped default) and unknown backends: stay conservative.
    return 2 << 20, None


def scaler_forward(x, rate, training=True, donate_input=False, use_pallas=True):
    """Pallas equivalent of Scaler.forward.

    x: float array, any shape (NCHW for conv activations).
    rate: python float.
    training: bool — in eval mode the module is the identity.
    donate_input: alias x's buffer to the output (only effective when x.size
                  is a multiple of 128, i.e. the tail-free fast path).
    use_pallas: if False, emit plain XLA so it can fuse into neighbors.
    """
    if not training:
        # Eval mode: identity, no compute needed.
        return x

    inv_rate = 1.0 / float(rate)

    if not use_pallas:
        return (x * inv_rate).astype(x.dtype)

    orig_shape = x.shape
    n = x.size
    itemsize = jnp.dtype(x.dtype).itemsize
    n_main = (n // _LANES) * _LANES

    if n_main == 0:
        # Tiny tensor (< 128 elements): not worth a custom call.
        return (x * inv_rate).astype(x.dtype)

    x_flat = x.reshape(-1)
    if n_main == n:
        x_main, tail = x_flat, None          # zero-copy path
    else:
        x_main, tail = x_flat[:n_main], x_flat[n_main:]

    rows = n_main // _LANES
    x2d = x_main.reshape(rows, _LANES)

    # --- dtype- and generation-aware block sizing --------------------------
    sub = _min_sublanes(x.dtype)
    target_bytes, vmem_limit = _block_config()
    block_rows = max(sub, target_bytes // (_LANES * itemsize))
    block_rows = _round_up(block_rows, sub)
    rows_padded = _round_up(rows, sub)
    block_rows = min(block_rows, rows_padded)

    # Megacore: make sure mid/large tensors get >= 2 grid steps so v7x's
    # second TensorCore (and its DMA engines) is used.
    if (block_rows >= rows_padded
            and rows_padded >= 2 * sub
            and rows_padded * _LANES * itemsize >= (1 << 20)):
        block_rows = _round_up(pl.cdiv(rows_padded, 2), sub)

    grid = (pl.cdiv(rows, block_rows),)

    cp_kwargs = dict(dimension_semantics=("parallel",))
    if vmem_limit is not None:
        cp_kwargs["vmem_limit_bytes"] = vmem_limit

    out2d = pl.pallas_call(
        _make_scaler_kernel(inv_rate),
        out_shape=jax.ShapeDtypeStruct((rows, _LANES), x.dtype),
        grid=grid,
        in_specs=[pl.BlockSpec((block_rows, _LANES), lambda i: (i, 0))],
        out_specs=pl.BlockSpec((block_rows, _LANES), lambda i: (i, 0)),
        input_output_aliases=(
            {0: 0} if (donate_input and tail is None) else {}),
        compiler_params=pltpu.CompilerParams(**cp_kwargs),
        cost_estimate=pl.CostEstimate(
            flops=n_main,
            transcendentals=0,
            bytes_accessed=2 * n_main * itemsize),
    )(x2d)

    out_flat = out2d.reshape(-1)
    if tail is not None:
        # <128-element remainder scaled by XLA (fuses into the concatenate).
        out_flat = jnp.concatenate(
            [out_flat, (tail * inv_rate).astype(x.dtype)])
    return out_flat.reshape(orig_shape)


if __name__ == "__main__":
    key = jax.random.PRNGKey(0)
    rate = 0.25  # Scaler(rate) — deterministic "parameter" set in-script.

    # Small NCHW activation tensor, consistent with conv-style inputs.
    x = jax.random.normal(key, (2, 4, 16, 16), dtype=jnp.float32)

    # Training mode: y = x / rate
    y_train = jax.block_until_ready(scaler_forward(x, rate, training=True))
    # Eval mode: identity
    y_eval = jax.block_until_ready(scaler_forward(x, rate, training=False))

    assert jnp.allclose(y_train, x / rate, atol=1e-5, rtol=1e-5)
    assert jnp.array_equal(y_eval, x)
    assert y_train.shape == x.shape and y_train.dtype == x.dtype

    # Exercise the non-multiple-of-128 tail path (kernel prefix + XLA tail).
    x_odd = jax.random.normal(jax.random.PRNGKey(1), (2, 67), dtype=jnp.float32)
    y_odd = jax.block_until_ready(scaler_forward(x_odd, rate, training=True))
    assert jnp.allclose(y_odd, x_odd / rate, atol=1e-5, rtol=1e-5)
    assert y_odd.shape == x_odd.shape and y_odd.dtype == x_odd.dtype

    # Exercise a bf16 input (dtype-aware sublane rounding / block sizing).
    x_bf16 = jax.random.normal(
        jax.random.PRNGKey(2), (2, 4, 16, 16)).astype(jnp.bfloat16)
    y_bf16 = jax.block_until_ready(scaler_forward(x_bf16, rate, training=True))
    assert jnp.allclose(y_bf16.astype(jnp.float32),
                        x_bf16.astype(jnp.float32) / rate,
                        atol=1e-2, rtol=1e-2)
    assert y_bf16.dtype == jnp.bfloat16

    print("KERNEL_OK")
</pallas_src>

<mosaic_0001>
module attributes {stable_mosaic.version = 11 : i64} {
  func.func @kernel(%arg0: i32, %arg1: memref<16x128xf32, #tpu.memory_space<vmem>>, %arg2: memref<16x128xf32, #tpu.memory_space<vmem>>) attributes {dimension_semantics = [#tpu.dimension_semantics<parallel>], iteration_bounds = array<i64: 1>, scalar_prefetch = 0 : i64, scratch_operands = 0 : i64, tpu.core_type = #tpu.core_type<tc>, window_params = [{transform_indices = @transform_0, window_bounds = array<i64: 16, 128>}, {transform_indices = @transform_1, window_bounds = array<i64: 16, 128>}]} {
    %c0 = arith.constant 0 : index
    %c0_0 = arith.constant 0 : index
    %0 = vector.load %arg1[%c0, %c0_0] : memref<16x128xf32, #tpu.memory_space<vmem>>, vector<16x128xf32>
    %cst = arith.constant 4.000000e+00 : f32
    %1 = vector.broadcast %cst : f32 to vector<16x128xf32>
    %2 = arith.mulf %0, %1 : vector<16x128xf32>
    %c0_1 = arith.constant 0 : index
    %c0_2 = arith.constant 0 : index
    %3 = vector.load %arg2[%c0_1, %c0_2] : memref<16x128xf32, #tpu.memory_space<vmem>>, vector<16x128xf32>
    tpu.vector_store %arg2[%c0_1, %c0_2], %2 {strides = array<i32>} : memref<16x128xf32, #tpu.memory_space<vmem>>, vector<16x128xf32>,
    return
  }
  func.func @transform_0(%arg0: i32) -> (i32, i32) {
    %c0_i32 = arith.constant 0 : i32
    %c0_i32_0 = arith.constant 0 : i32
    return %arg0, %c0_i32 : i32, i32
  }
  func.func @transform_1(%arg0: i32) -> (i32, i32) {
    %c0_i32 = arith.constant 0 : i32
    %c0_i32_0 = arith.constant 0 : i32
    return %arg0, %c0_i32 : i32, i32
  }
}

</mosaic_0001>

<llo_original>
// kernel: tpu_custom_call.1
$region0: #{tpu_custom_call.1}
  #allocation0 [shape = 'u32[]', space=smem, size = 0x4, offset = 0x4, fixed_abs, tag = 'smem constant byte address 0x4 - core index']
  #allocation1 [shape = 'u32[144,128]{1,0:T(1,128)}', space=vmem, size = 0x12000, scoped, tag = 'internal scratch']
  %s0 = inlined_call_operand.hbm [shape: f32[16,128], index: 0, kind: input, shape index: {}]
  %s1 = inlined_call_operand.hbm [shape: f32[16,128], index: 1, kind: output, shape index: {}]
  %s2 = sld [smem:[#allocation0]]
  $region18: #{tpu_custom_call.1} parent=0
    _
  %s4 = ssub.s32 1, %s2
  %s5 = scalar_select 0, %s4, %s2
  $region1: #{tpu_custom_call.1} parent=0
    #allocation2 [shape = 'u8[8192]{0}', space=vmem, size = 0x2000, scoped, tag = 'input window, operand 0, single buffered']
    #allocation3 [shape = 's32[1]{0}', space=sflag, size = 0x4, scoped, tag = 'scoped memory for tpu_custom_call.1']
    #allocation4 [shape = 's32[1]{0}', space=sflag, size = 0x4, scoped, tag = 'scoped memory for tpu_custom_call.1']
    #allocation5 [shape = 'u8[8192]{0}', space=vmem, size = 0x2000, scoped, tag = 'output window, operand 0, single buffered']
    %6 = vsyncpa [#allocation3], 0
    %7 = vsyncpa [#allocation4], 0
    // Predicated region
    $region2: #{tpu_custom_call.1} parent=1 // pred_check
      _
    $region3: #{tpu_custom_call.1} parent=1 // pred_check_branch
      %9 = sbr.rel (0) target = $region5
    $region4: #{tpu_custom_call.1} parent=1 // pred_region
      %s11 = ssub.s32 256, 256
      %12 = vsyncadd [#allocation3], %s11
      %s13 = sshll.u32 [#allocation2], 4
      %s14 = int_to_ptr.vmem [resolvable:$true] %s13
      %19 = dma.hbm_to_vmem [thread:$0]  %s0, 256, %s14, [#allocation3], 128, 128, 8
    $region5: #{tpu_custom_call.1} parent=1 // pred_fallthru
      _
    // Predicated region
    $region6: #{tpu_custom_call.1} parent=1 // pred_check
      _
    $region7: #{tpu_custom_call.1} parent=1 // pred_check_branch
      %21 = sbr.rel (0) target = $region9
    $region8: #{tpu_custom_call.1} parent=1 // pred_region
      %22 = dma.done [#allocation3], 256
    $region9: #{tpu_custom_call.1} parent=1 // pred_fallthru
      _
    %v23 = vld [vmem:[#allocation2] sm:$0xff]
    %v24 = vld [vmem:[#allocation2 + $0x8] sm:$0xff]
    %v25 = vmul.f32 %v23, 4.0
    %v26 = vmul.f32 %v24, 4.0
    %27 = vst [vmem:[#allocation5] sm:$0xff] %v25
    %28 = vst [vmem:[#allocation5 + $0x8] sm:$0xff] %v26
    // Predicated region
    $region10: #{tpu_custom_call.1} parent=1 // pred_check
      _
    $region11: #{tpu_custom_call.1} parent=1 // pred_check_branch
      %30 = sbr.rel (0) target = $region13
    $region12: #{tpu_custom_call.1} parent=1 // pred_region
      %s32 = ssub.s32 256, 256
      %33 = vsyncadd [#allocation4], %s32
      %s34 = sshll.u32 [#allocation5], 4
      %s35 = int_to_ptr.vmem [resolvable:$true] %s34
      %40 = dma.vmem_to_hbm [thread:$0]  %s35, 256, %s1, [#allocation4], 128, 128, 8
    $region13: #{tpu_custom_call.1} parent=1 // pred_fallthru
      _
    // Predicated region
    $region14: #{tpu_custom_call.1} parent=1 // pred_check
      _
    $region15: #{tpu_custom_call.1} parent=1 // pred_check_branch
      %42 = sbr.rel (0) target = $region17
    $region16: #{tpu_custom_call.1} parent=1 // pred_region
      %43 = dma.done [#allocation4], 256
    $region17: #{tpu_custom_call.1} parent=1 // pred_fallthru
      _
    %44 = vsyncpa [#allocation3], 1
    %45 = vsyncpa [#allocation4], 1

</llo_original>
